<compile_context>
chip_gen: v7x
topology: tpu7x:2x2x1
jax: 0.10.0
libtpu: 0.0.40
codegen_flags: <defaults>
</compile_context>

<pallas_src>
import functools

import jax
import jax.numpy as jnp
from jax import lax
from jax.experimental import pallas as pl
from jax.experimental.pallas import tpu as pltpu


_TN_MAX = 256    # batch-tile rows (sublane axis)
_TC_MAX = 4096   # class-tile width (lane axis). 256x4096 f32 tile = 4 MiB;
                 # double-buffered input + f32 exp temp stays far under 48 MiB VMEM.


def _round_up(x, m):
    return (x + m - 1) // m * m


def _ce_kernel(logits_ref, targets_ref, loss_ref, m_sc, l_sc, p_sc, *, tc, n_c_tiles):
    ci = pl.program_id(1)

    @pl.when(ci == 0)
    def _init():
        m_sc[...] = jnp.full(m_sc.shape, -jnp.inf, m_sc.dtype)
        l_sc[...] = jnp.zeros(l_sc.shape, l_sc.dtype)
        p_sc[...] = jnp.zeros(p_sc.shape, p_sc.dtype)

    x = logits_ref[...]                                  # (TN, TC) stored dtype
    t = targets_ref[...]                                 # (TN, 1) int32
    t_local = t - ci * tc                                # shift the target, not the iota
    col = lax.broadcasted_iota(jnp.int32, x.shape, 1)    # local 0..tc-1 (constant)

    # --- online logsumexp across class tiles ---
    # Padded columns were filled with the dtype's finite min in the wrapper, so
    # they never win the max and exp() underflows to 0 -> no masking needed here.
    m_prev = m_sc[...]
    m_tile = jnp.max(x, axis=-1, keepdims=True).astype(jnp.float32)   # max exact in bf16
    m_new = jnp.maximum(m_prev, m_tile)
    alpha = jnp.exp(m_prev - m_new)
    p = jnp.exp(x.astype(jnp.float32) - m_new)           # only f32 per-element work
    l_sc[...] = alpha * l_sc[...] + jnp.sum(p, axis=-1, keepdims=True)
    m_sc[...] = m_new

    # --- target logit via one-hot pick in the stored dtype (exact: single hit) ---
    zero = jnp.zeros((), x.dtype)
    p_sc[...] = p_sc[...] + jnp.sum(
        jnp.where(col == t_local, x, zero), axis=-1, keepdims=True
    ).astype(jnp.float32)

    @pl.when(ci == n_c_tiles - 1)
    def _finalize():
        lse = jnp.log(l_sc[...]) + m_sc[...]              # (TN, 1)
        per_row = lse - p_sc[...]                         # (TN, 1)
        valid = t >= 0                                    # ignore_index / padded rows -> -1
        loss_sum = jnp.sum(jnp.where(valid, per_row, 0.0))
        loss_ref[...] = jnp.broadcast_to(loss_sum, loss_ref.shape).astype(jnp.float32)


def cross_entropy_loss(logits, targets, ignore_index=-100):
    """logits: (N, C) float (f32/bf16); targets: (N,) integer class indices.
    Returns scalar f32 mean cross-entropy, matching nn.CrossEntropyLoss()."""
    n, c = logits.shape
    itemsize = jnp.dtype(logits.dtype).itemsize
    row_align = 8 if itemsize >= 4 else 16               # bf16 native tile is (16,128)

    tn = min(_TN_MAX, _round_up(n, row_align))
    # Prefer >=2 batch tiles so the "parallel" axis can use both v7x TensorCores.
    while tn > row_align and _round_up(n, tn) // tn < 2:
        tn = _round_up(tn // 2, row_align)
    tc = min(_TC_MAX, _round_up(c, 128))

    n_pad = _round_up(n, tn)
    c_pad = _round_up(c, tc)
    n_tiles = n_pad // tn
    c_tiles = c_pad // tc

    # Pad logits with the dtype's finite min (self-masking: never wins the max,
    # exp underflows to 0, and no NaNs from -inf accumulators on padded rows).
    pad_val = jnp.finfo(logits.dtype).min
    logits_p = logits
    if (n_pad, c_pad) != (n, c):
        logits_p = jnp.pad(logits, ((0, n_pad - n), (0, c_pad - c)),
                           constant_values=pad_val)

    # Map ignore_index / out-of-range targets to -1 so they match no class and
    # are excluded from the mean; pad rows likewise with -1.
    t = targets.astype(jnp.int32)
    t = jnp.where(t == ignore_index, jnp.int32(-1), t)
    t = jnp.where(jnp.logical_and(t >= 0, t < c), t, jnp.int32(-1))
    count = jnp.sum((t >= 0).astype(jnp.float32))         # tiny: plain JAX
    if n_pad != n:
        t = jnp.pad(t, (0, n_pad - n), constant_values=-1)
    t = t.reshape(n_pad, 1)

    kernel = functools.partial(_ce_kernel, tc=tc, n_c_tiles=c_tiles)

    loss_part = pl.pallas_call(
        kernel,
        out_shape=jax.ShapeDtypeStruct((n_tiles, 8, 128), jnp.float32),
        grid_spec=pltpu.PrefetchScalarGridSpec(
            num_scalar_prefetch=0,
            grid=(n_tiles, c_tiles),
            in_specs=[
                pl.BlockSpec((tn, tc), lambda i, j: (i, j)),
                pl.BlockSpec((tn, 1), lambda i, j: (i, 0)),
            ],
            out_specs=pl.BlockSpec((1, 8, 128), lambda i, j: (i, 0, 0)),
            scratch_shapes=[
                pltpu.VMEM((tn, 1), jnp.float32),   # running max
                pltpu.VMEM((tn, 1), jnp.float32),   # running sum(exp)
                pltpu.VMEM((tn, 1), jnp.float32),   # picked target logit
            ],
        ),
        compiler_params=pltpu.CompilerParams(
            dimension_semantics=("parallel", "arbitrary"),
            vmem_limit_bytes=48 * 1024 * 1024,      # headroom on v7x's 64 MiB VMEM
        ),
        cost_estimate=pl.CostEstimate(
            flops=5 * n_pad * c_pad,
            transcendentals=n_pad * c_pad,
            bytes_accessed=n_pad * c_pad * itemsize + 4 * n_pad,
        ),
    )(logits_p, t)

    total = jnp.sum(loss_part[:, 0, 0])
    # Note: if every target is ignore_index, count==0 and this is NaN, matching
    # PyTorch's mean reduction in that case.
    return (total / count).astype(jnp.float32)


def _reference_ce(logits, targets, ignore_index=-100):
    logits = logits.astype(jnp.float32)
    n, c = logits.shape
    valid = jnp.logical_and(targets != ignore_index,
                            jnp.logical_and(targets >= 0, targets < c))
    safe_t = jnp.where(valid, targets, 0)
    lse = jax.nn.logsumexp(logits, axis=-1)
    picked = jnp.take_along_axis(logits, safe_t[:, None], axis=-1)[:, 0]
    per_row = jnp.where(valid, lse - picked, 0.0)
    return jnp.sum(per_row) / jnp.sum(valid.astype(jnp.float32))


if __name__ == "__main__":
    key = jax.random.PRNGKey(0)
    k1, k2, k3, k4, k5, k6 = jax.random.split(key, 6)

    # Case 1: small batch of logits over 32 classes (matches the module spec).
    N1, C1 = 8, 32
    logits1 = jax.random.normal(k1, (N1, C1), dtype=jnp.float32)
    targets1 = jax.random.randint(k2, (N1,), 0, C1, dtype=jnp.int32)
    loss1 = cross_entropy_loss(logits1, targets1)
    jax.block_until_ready(loss1)
    ref1 = _reference_ce(logits1, targets1)
    assert jnp.allclose(loss1, ref1, atol=1e-5, rtol=1e-5), (loss1, ref1)

    # Case 2: ragged shapes (row + class padding) and one ignored target (-100).
    N2, C2 = 10, 200
    logits2 = jax.random.normal(k3, (N2, C2), dtype=jnp.float32)
    targets2 = jax.random.randint(k4, (N2,), 0, C2, dtype=jnp.int32)
    targets2 = targets2.at[3].set(-100)
    loss2 = cross_entropy_loss(logits2, targets2)
    jax.block_until_ready(loss2)
    ref2 = _reference_ce(logits2, targets2)
    assert jnp.allclose(loss2, ref2, atol=1e-5, rtol=1e-5), (loss2, ref2)

    # Case 3: bf16 logits (streamed in stored dtype; max/pick run bf16-native).
    N3, C3 = 24, 384
    logits3 = jax.random.normal(k5, (N3, C3), dtype=jnp.bfloat16)
    targets3 = jax.random.randint(k6, (N3,), 0, C3, dtype=jnp.int32)
    loss3 = cross_entropy_loss(logits3, targets3)
    jax.block_until_ready(loss3)
    ref3 = _reference_ce(logits3, targets3)
    assert jnp.allclose(loss3, ref3, atol=3e-3, rtol=3e-3), (loss3, ref3)

    print("KERNEL_OK")
</pallas_src>

<mosaic_0001>
module attributes {stable_mosaic.version = 11 : i64} {
  func.func @_ce_kernel(%arg0: i32, %arg1: i32, %arg2: memref<8x128xf32, #tpu.memory_space<vmem>>, %arg3: memref<8x1xi32, #tpu.memory_space<vmem>>, %arg4: memref<1x8x128xf32, #tpu.memory_space<vmem>>, %arg5: memref<8x1xf32, #tpu.memory_space<vmem>>, %arg6: memref<8x1xf32, #tpu.memory_space<vmem>>, %arg7: memref<8x1xf32, #tpu.memory_space<vmem>>) attributes {dimension_semantics = [#tpu.dimension_semantics<parallel>, #tpu.dimension_semantics<arbitrary>], iteration_bounds = array<i64: 1, 1>, scalar_prefetch = 0 : i64, scratch_operands = 3 : i64, tpu.core_type = #tpu.core_type<tc>, window_params = [{transform_indices = @transform_0, window_bounds = array<i64: 8, 128>}, {transform_indices = @transform_1, window_bounds = array<i64: 8, 1>}, {transform_indices = @transform_2, window_bounds = array<i64: 1, 8, 128>}]} {
    %c0_i32 = arith.constant 0 : i32
    %0 = arith.cmpi eq, %arg1, %c0_i32 : i32
    %1 = arith.extui %0 : i1 to i32
    %c0_i32_0 = arith.constant 0 : i32
    %2 = arith.cmpi ne, %1, %c0_i32_0 : i32
    scf.if %2 {
      %cst_21 = arith.constant 0xFF800000 : f32
      %37 = vector.broadcast %cst_21 : f32 to vector<8x1xf32>
      %c0_22 = arith.constant 0 : index
      %c0_23 = arith.constant 0 : index
      %38 = vector.load %arg5[%c0_22, %c0_23] : memref<8x1xf32, #tpu.memory_space<vmem>>, vector<8x1xf32>
      tpu.vector_store %arg5[%c0_22, %c0_23], %37 {strides = array<i32>} : memref<8x1xf32, #tpu.memory_space<vmem>>, vector<8x1xf32>,
      %cst_24 = arith.constant 0.000000e+00 : f32
      %39 = vector.broadcast %cst_24 : f32 to vector<8x1xf32>
      %c0_25 = arith.constant 0 : index
      %c0_26 = arith.constant 0 : index
      %40 = vector.load %arg6[%c0_25, %c0_26] : memref<8x1xf32, #tpu.memory_space<vmem>>, vector<8x1xf32>
      tpu.vector_store %arg6[%c0_25, %c0_26], %39 {strides = array<i32>} : memref<8x1xf32, #tpu.memory_space<vmem>>, vector<8x1xf32>,
      %cst_27 = arith.constant 0.000000e+00 : f32
      %41 = vector.broadcast %cst_27 : f32 to vector<8x1xf32>
      %c0_28 = arith.constant 0 : index
      %c0_29 = arith.constant 0 : index
      %42 = vector.load %arg7[%c0_28, %c0_29] : memref<8x1xf32, #tpu.memory_space<vmem>>, vector<8x1xf32>
      tpu.vector_store %arg7[%c0_28, %c0_29], %41 {strides = array<i32>} : memref<8x1xf32, #tpu.memory_space<vmem>>, vector<8x1xf32>,
    } else {
    }
    %c0 = arith.constant 0 : index
    %c0_1 = arith.constant 0 : index
    %3 = vector.load %arg2[%c0, %c0_1] : memref<8x128xf32, #tpu.memory_space<vmem>>, vector<8x128xf32>
    %c0_2 = arith.constant 0 : index
    %c0_3 = arith.constant 0 : index
    %4 = vector.load %arg3[%c0_2, %c0_3] : memref<8x1xi32, #tpu.memory_space<vmem>>, vector<8x1xi32>
    %c128_i32 = arith.constant 128 : i32
    %5 = arith.muli %arg1, %c128_i32 : i32
    %6 = vector.broadcast %5 : i32 to vector<8x1xi32>
    %7 = arith.subi %4, %6 : vector<8x1xi32>
    %8 = tpu.iota {dimensions = array<i32: 1>} : vector<8x128xi32>
    %c0_4 = arith.constant 0 : index
    %c0_5 = arith.constant 0 : index
    %9 = vector.load %arg5[%c0_4, %c0_5] : memref<8x1xf32, #tpu.memory_space<vmem>>, vector<8x1xf32>
    %cst = arith.constant dense<0xFF800000> : vector<8xf32>
    %10 = vector.multi_reduction <maximumf>, %3, %cst [1] : vector<8x128xf32> to vector<8xf32>
    %11 = vector.shape_cast %10 : vector<8xf32> to vector<8x1xf32>
    %12 = arith.maximumf %9, %11 : vector<8x1xf32>
    %13 = arith.subf %9, %12 : vector<8x1xf32>
    %14 = math.exp %13 : vector<8x1xf32>
    %15 = vector.broadcast %12 : vector<8x1xf32> to vector<8x128xf32>
    %16 = arith.subf %3, %15 : vector<8x128xf32>
    %17 = math.exp %16 : vector<8x128xf32>
    %c0_6 = arith.constant 0 : index
    %c0_7 = arith.constant 0 : index
    %18 = vector.load %arg6[%c0_6, %c0_7] : memref<8x1xf32, #tpu.memory_space<vmem>>, vector<8x1xf32>
    %19 = arith.mulf %14, %18 : vector<8x1xf32>
    %cst_8 = arith.constant dense<0.000000e+00> : vector<8xf32>
    %20 = vector.multi_reduction <add>, %17, %cst_8 [1] : vector<8x128xf32> to vector<8xf32>
    %21 = vector.shape_cast %20 : vector<8xf32> to vector<8x1xf32>
    %22 = arith.addf %19, %21 : vector<8x1xf32>
    %c0_9 = arith.constant 0 : index
    %c0_10 = arith.constant 0 : index
    %23 = vector.load %arg6[%c0_9, %c0_10] : memref<8x1xf32, #tpu.memory_space<vmem>>, vector<8x1xf32>
    tpu.vector_store %arg6[%c0_9, %c0_10], %22 {strides = array<i32>} : memref<8x1xf32, #tpu.memory_space<vmem>>, vector<8x1xf32>,
    %c0_11 = arith.constant 0 : index
    %c0_12 = arith.constant 0 : index
    %24 = vector.load %arg5[%c0_11, %c0_12] : memref<8x1xf32, #tpu.memory_space<vmem>>, vector<8x1xf32>
    tpu.vector_store %arg5[%c0_11, %c0_12], %12 {strides = array<i32>} : memref<8x1xf32, #tpu.memory_space<vmem>>, vector<8x1xf32>,
    %c0_13 = arith.constant 0 : index
    %c0_14 = arith.constant 0 : index
    %25 = vector.load %arg7[%c0_13, %c0_14] : memref<8x1xf32, #tpu.memory_space<vmem>>, vector<8x1xf32>
    %26 = vector.broadcast %7 : vector<8x1xi32> to vector<8x128xi32>
    %27 = arith.cmpi eq, %8, %26 : vector<8x128xi32>
    %cst_15 = arith.constant 0.000000e+00 : f32
    %28 = vector.broadcast %cst_15 : f32 to vector<8x128xf32>
    %29 = arith.select %27, %3, %28 : vector<8x128xi1>, vector<8x128xf32>
    %cst_16 = arith.constant dense<0.000000e+00> : vector<8xf32>
    %30 = vector.multi_reduction <add>, %29, %cst_16 [1] : vector<8x128xf32> to vector<8xf32>
    %31 = vector.shape_cast %30 : vector<8xf32> to vector<8x1xf32>
    %32 = arith.addf %25, %31 : vector<8x1xf32>
    %c0_17 = arith.constant 0 : index
    %c0_18 = arith.constant 0 : index
    %33 = vector.load %arg7[%c0_17, %c0_18] : memref<8x1xf32, #tpu.memory_space<vmem>>, vector<8x1xf32>
    tpu.vector_store %arg7[%c0_17, %c0_18], %32 {strides = array<i32>} : memref<8x1xf32, #tpu.memory_space<vmem>>, vector<8x1xf32>,
    %c0_i32_19 = arith.constant 0 : i32
    %34 = arith.cmpi eq, %arg1, %c0_i32_19 : i32
    %35 = arith.extui %34 : i1 to i32
    %c0_i32_20 = arith.constant 0 : i32
    %36 = arith.cmpi ne, %35, %c0_i32_20 : i32
    scf.if %36 {
      %c0_21 = arith.constant 0 : index
      %c0_22 = arith.constant 0 : index
      %37 = vector.load %arg6[%c0_21, %c0_22] : memref<8x1xf32, #tpu.memory_space<vmem>>, vector<8x1xf32>
      %38 = math.log %37 : vector<8x1xf32>
      %c0_23 = arith.constant 0 : index
      %c0_24 = arith.constant 0 : index
      %39 = vector.load %arg5[%c0_23, %c0_24] : memref<8x1xf32, #tpu.memory_space<vmem>>, vector<8x1xf32>
      %40 = arith.addf %38, %39 : vector<8x1xf32>
      %c0_25 = arith.constant 0 : index
      %c0_26 = arith.constant 0 : index
      %41 = vector.load %arg7[%c0_25, %c0_26] : memref<8x1xf32, #tpu.memory_space<vmem>>, vector<8x1xf32>
      %42 = arith.subf %40, %41 : vector<8x1xf32>
      %c0_i32_27 = arith.constant 0 : i32
      %43 = vector.broadcast %c0_i32_27 : i32 to vector<8x1xi32>
      %44 = arith.cmpi sge, %4, %43 : vector<8x1xi32>
      %cst_28 = arith.constant 0.000000e+00 : f32
      %45 = vector.broadcast %cst_28 : f32 to vector<8x1xf32>
      %46 = arith.select %44, %42, %45 : vector<8x1xi1>, vector<8x1xf32>
      %47 = vector.shape_cast %46 : vector<8x1xf32> to vector<1x8x1xf32>
      %cst_29 = arith.constant dense<0.000000e+00> : vector<1xf32>
      %48 = vector.multi_reduction <add>, %47, %cst_29 [1, 2] : vector<1x8x1xf32> to vector<1xf32>
      %49 = vector.shape_cast %48 : vector<1xf32> to vector<1x1x1xf32>
      %50 = vector.extract %49[0, 0, 0] : f32 from vector<1x1x1xf32>
      %51 = vector.broadcast %50 : f32 to vector<1x8x128xf32>
      %c0_30 = arith.constant 0 : index
      %c0_31 = arith.constant 0 : index
      %c0_32 = arith.constant 0 : index
      %52 = vector.load %arg4[%c0_30, %c0_31, %c0_32] : memref<1x8x128xf32, #tpu.memory_space<vmem>>, vector<1x8x128xf32>
      tpu.vector_store %arg4[%c0_30, %c0_31, %c0_32], %51 {strides = array<i32>} : memref<1x8x128xf32, #tpu.memory_space<vmem>>, vector<1x8x128xf32>,
    } else {
    }
    return
  }
  func.func @transform_0(%arg0: i32, %arg1: i32) -> (i32, i32) {
    %c0_i32 = arith.constant 0 : i32
    return %arg0, %arg1 : i32, i32
  }
  func.func @transform_1(%arg0: i32, %arg1: i32) -> (i32, i32) {
    %c0_i32 = arith.constant 0 : i32
    %c0_i32_0 = arith.constant 0 : i32
    return %arg0, %c0_i32 : i32, i32
  }
  func.func @transform_2(%arg0: i32, %arg1: i32) -> (i32, i32, i32) {
    %c0_i32 = arith.constant 0 : i32
    %c0_i32_0 = arith.constant 0 : i32
    %c0_i32_1 = arith.constant 0 : i32
    return %arg0, %c0_i32, %c0_i32_0 : i32, i32, i32
  }
}

</mosaic_0001>

<llo_original>
// kernel: tpu_custom_call.1
$region0: #{tpu_custom_call.1}
  #allocation0 [shape = 'u32[]', space=smem, size = 0x4, offset = 0x4, fixed_abs, tag = 'smem constant byte address 0x4 - core index']
  #allocation1 [shape = 'u32[144,128]{1,0:T(1,128)}', space=vmem, size = 0x12000, scoped, tag = 'internal scratch']
  #allocation2 [shape = 'f32[8,1]{1,0:T(8,128)}', space=vmem, size = 0x1000, scoped, tag = 'scratch operand']
  #allocation3 [shape = 'f32[8,1]{1,0:T(8,128)}', space=vmem, size = 0x1000, scoped, tag = 'scratch operand']
  #allocation4 [shape = 'f32[8,1]{1,0:T(8,128)}', space=vmem, size = 0x1000, scoped, tag = 'scratch operand']
  %s0 = inlined_call_operand.vmem [shape: f32[8,128], index: 0, kind: input, shape index: {}]
  %s1 = inlined_call_operand.vmem [shape: s32[8,1], index: 1, kind: input, shape index: {}]
  %s2 = inlined_call_operand.hbm [shape: f32[1,8,128], index: 2, kind: output, shape index: {}]
  %s3 = sld [smem:[#allocation0]]
  $region26: #{tpu_custom_call.1} parent=0
    _
  %s5 = ssub.s32 1, %s3
  %s6 = scalar_select 0, %s5, %s3
  $region1: #{tpu_custom_call.1} parent=0
    #allocation5 [shape = 'u8[4096]{0}', space=vmem, size = 0x1000, scoped, tag = 'output window, operand 0, single buffered']
    #allocation6 [shape = 's32[1]{0}', space=sflag, size = 0x4, scoped, tag = 'scoped memory for tpu_custom_call.1']
    %7 = vsyncpa [#allocation6], 0
    // Predicated region
    $region2: #{tpu_custom_call.1} parent=1 // pred_check
      _
    $region3: #{tpu_custom_call.1} parent=1 // pred_check_branch
      %9 = sbr.rel (0) target = $region5
    $region4: #{tpu_custom_call.1} parent=1 // pred_region
      _
    $region5: #{tpu_custom_call.1} parent=1 // pred_fallthru
      _
    // Predicated region
    $region6: #{tpu_custom_call.1} parent=1 // pred_check
      _
    $region7: #{tpu_custom_call.1} parent=1 // pred_check_branch
      %11 = sbr.rel (0) target = $region9
    $region8: #{tpu_custom_call.1} parent=1 // pred_region
      _
    $region9: #{tpu_custom_call.1} parent=1 // pred_fallthru
      _
    %p12 = scmp.eq.s32.totalorder 0, 0
    // Predicated region
    $region10: #{tpu_custom_call.1} parent=1 // pred_check
      %p13 = pneg %p12
    $region11: #{tpu_custom_call.1} parent=1 // pred_check_branch
      %15 = sbr.rel (%p13) target = $region13
    $region12: #{tpu_custom_call.1} parent=1 // pred_region
      %vm16 = vcmask 7168
      %17 = vst.msk [vmem:[#allocation2] sm:$0xff] %vm16, -inf
      %18 = vst.msk [vmem:[#allocation3] sm:$0xff] %vm16, 0.0
      %19 = vst.msk [vmem:[#allocation4] sm:$0xff] %vm16, 0.0
    $region13: #{tpu_custom_call.1} parent=1 // pred_fallthru
      _
    %v20 = vld [vmem:[%s0] sm:$0xff]
    %v21 = vld [vmem:[%s1] sm:$0xff]
    %s22 = smul.u32 0, 128
    %v23 = vstv %s22
    %v24 = vsub.s32 %v21, %v23
    %v25 = vlaneseq
    %v26 = vand.u32 %v25, 127
    %v27 = vld [vmem:[#allocation2] sm:$0xff]
    %28 = vmax.xlane.f32.xlu0 %v20
    %v29 = vpop.xlane.xlu0 %28
    %v30 = vmax.f32 %v27, %v29
    %v31 = vsub.f32 %v27, %v30
    %v32 = vmul.f32 %v31, 1.442695
    %v33 = vpow.pop %v32
    %35 = vset.pattern.permute.xlu0 0
    %36 = vperm.xlu0 %35, %v30
    %v37 = vpop.permute.xlu0 %36
    %v39 = vsub.f32 %v20, %v37
    %v40 = vmul.f32 %v39, 1.442695
    %v41 = vpow.pop %v40
    %v42 = vld [vmem:[#allocation3] sm:$0xff]
    %v43 = vmul.f32 %v33, %v42
    %44 = vadd.xlane.f32.xlu0 %v41
    %v45 = vpop.xlane.xlu0 %44
    %v46 = vadd.f32 %v43, %v45
    %vm47 = vcmask 7168
    %48 = vst.msk [vmem:[#allocation3] sm:$0xff] %vm47, %v46
    %49 = vst.msk [vmem:[#allocation2] sm:$0xff] %vm47, %v30
    %v50 = vld [vmem:[#allocation4] sm:$0xff]
    %51 = vset.pattern.permute.xlu0 0
    %52 = vperm.xlu0 %51, %v24
    %v53 = vpop.permute.xlu0 %52
    %vm54 = vcmp.eq.s32.totalorder %v26, %v53
    %v55 = vsel %vm54, %v20, 0.0
    %56 = vadd.xlane.f32.xlu0 %v55
    %v57 = vpop.xlane.xlu0 %56
    %v58 = vadd.f32 %v50, %v57
    %59 = vst.msk [vmem:[#allocation4] sm:$0xff] %vm47, %v58
    // Predicated region
    $region14: #{tpu_custom_call.1} parent=1 // pred_check
      %p60 = pneg %p12
    $region15: #{tpu_custom_call.1} parent=1 // pred_check_branch
      %62 = sbr.rel (%p60) target = $region17
    $region16: #{tpu_custom_call.1} parent=1 // pred_region
      %v63 = vld [vmem:[#allocation3] sm:$0xff]
      %v64 = vlog2.pop %v63
      %v65 = vmul.f32 %v64, 0.6931472
      %v66 = vld [vmem:[#allocation2] sm:$0xff]
      %v67 = vadd.f32 %v65, %v66
      %v68 = vld [vmem:[#allocation4] sm:$0xff]
      %v69 = vsub.f32 %v67, %v68
      %vm70 = vcmp.ge.s32.totalorder %v21, 0
      %v71 = vsel %vm70, %v69, 0.0
      %v72 = vsel %vm47, %v71, 0.0
      %73 = vadd.xlane.f32.xlu0 %v72
      %v74 = vpop.xlane.xlu0 %73
      %v75 = vrot.slane %v74, 4
      %v76 = vadd.f32 %v74, %v75
      %v77 = vrot.slane %v76, 2
      %v78 = vadd.f32 %v76, %v77
      %v79 = vrot.slane %v78, 1
      %v80 = vadd.f32 %v78, %v79
      %s81 = vtos %v80
      %v82 = vstv %s81
      %83 = vst [vmem:[#allocation5] sm:$0xff] %v82
    $region17: #{tpu_custom_call.1} parent=1 // pred_fallthru
      _
    // Predicated region
    $region18: #{tpu_custom_call.1} parent=1 // pred_check
      _
    $region19: #{tpu_custom_call.1} parent=1 // pred_check_branch
      %85 = sbr.rel (0) target = $region21
    $region20: #{tpu_custom_call.1} parent=1 // pred_region
      %s87 = ssub.s32 128, 128
      %88 = vsyncadd [#allocation6], %s87
      %s90 = sshll.u32 [#allocation5], 4
      %s91 = int_to_ptr.vmem [resolvable:$true] %s90
      %93 = dma.vmem_to_hbm [thread:$0]  %s91, 128, %s2, [#allocation6]
    $region21: #{tpu_custom_call.1} parent=1 // pred_fallthru
      _
    // Predicated region
    $region22: #{tpu_custom_call.1} parent=1 // pred_check
      _
    $region23: #{tpu_custom_call.1} parent=1 // pred_check_branch
      %95 = sbr.rel (0) target = $region25
    $region24: #{tpu_custom_call.1} parent=1 // pred_region
      %96 = dma.done [#allocation6], 128
    $region25: #{tpu_custom_call.1} parent=1 // pred_fallthru
      _
    %97 = vsyncpa [#allocation6], 1

</llo_original>
